<compile_context>
chip_gen: v5e
topology: v5e:2x2
jax: 0.10.0
libtpu: 0.0.40
codegen_flags: <defaults>
</compile_context>

<pallas_src>
import functools

import jax
import jax.numpy as jnp
from jax.experimental import pallas as pl
from jax.experimental.pallas import tpu as pltpu


def _round_up(n, m):
    return ((n + m - 1) // m) * m


def _cls_unseen_kernel(x_ref, w1_ref, b1_ref, w_ref, o_ref):
    """Fused ClsUnseenTrain forward, single grid step (all tiles resident in VMEM).

    x_ref  : (B, in_sz)        input features
    w1_ref : (att_p, in_sz)    fc1 weight, PyTorch (out, in) layout, att padded to 128
    b1_ref : (1, att_p)        fc1 bias (padded)
    w_ref  : (cls_p, att_p)    attribute matrix W (padded)
    o_ref  : (B, cls_p)        output logits (padded)
    """
    nt = (((1,), (1,)), ((), ()))  # contract last dims of both operands -> x @ W^T

    # fc1: (B, in_sz) x (att_p, in_sz) -> (B, att_p), f32 accumulate on the MXU
    f = jax.lax.dot_general(
        x_ref[...], w1_ref[...],
        dimension_numbers=nt,
        preferred_element_type=jnp.float32,
    ) + b1_ref[...]

    # f @ W^T: (B, att_p) x (cls_p, att_p) -> (B, cls_p)
    out = jax.lax.dot_general(
        f, w_ref[...],
        dimension_numbers=nt,
        preferred_element_type=jnp.float32,
    )
    o_ref[...] = out.astype(o_ref.dtype)


def prepare_params(fc1_weight, fc1_bias, W):
    """One-time zero-padding of the parameters to lane-dense (multiple-of-128) shapes.

    fc1_weight: (att_dim, in_sz)   PyTorch nn.Linear layout
    fc1_bias  : (att_dim,)
    W         : (num_cls, att_dim) attribute matrix
    """
    att_dim, _ = fc1_weight.shape
    num_cls, att_dim_w = W.shape
    assert att_dim_w == att_dim, "W.shape[1] must equal fc1 out_features"

    att_p = _round_up(att_dim, 128)
    cls_p = _round_up(num_cls, 128)

    w1_p = jnp.pad(fc1_weight, ((0, att_p - att_dim), (0, 0)))
    b1_p = jnp.pad(fc1_bias, (0, att_p - att_dim)).reshape(1, att_p)
    w_p = jnp.pad(W, ((0, cls_p - num_cls), (0, att_p - att_dim)))
    return w1_p, b1_p, w_p


@functools.partial(jax.jit, static_argnames=("num_cls",))
def cls_unseen_forward(feats, w1_p, b1_p, w_p, *, num_cls):
    """feats: (B, in_sz) f32.  w1_p/b1_p/w_p: padded params from prepare_params."""
    B, in_sz = feats.shape
    att_p = w1_p.shape[0]
    cls_p = w_p.shape[0]
    assert w1_p.shape[1] == in_sz and w_p.shape[1] == att_p

    out_p = pl.pallas_call(
        _cls_unseen_kernel,
        out_shape=jax.ShapeDtypeStruct((B, cls_p), feats.dtype),
        grid_spec=pltpu.PrefetchScalarGridSpec(
            num_scalar_prefetch=0,
            grid=(1,),  # single step: whole problem (< 1 MiB of weights) fits in VMEM
            in_specs=[
                pl.BlockSpec((B, in_sz), lambda i: (0, 0)),       # feats
                pl.BlockSpec((att_p, in_sz), lambda i: (0, 0)),   # fc1 weight (NT)
                pl.BlockSpec((1, att_p), lambda i: (0, 0)),       # fc1 bias
                pl.BlockSpec((cls_p, att_p), lambda i: (0, 0)),   # W (NT)
            ],
            out_specs=pl.BlockSpec((B, cls_p), lambda i: (0, 0)),
        ),
        compiler_params=pltpu.CompilerParams(
            dimension_semantics=("arbitrary",),
        ),
    )(feats, w1_p, b1_p, w_p)

    # Padded class columns are exactly zero; drop them.
    return out_p[:, :num_cls]


if __name__ == "__main__":
    key = jax.random.PRNGKey(0)
    k_feat, k_w1, k_b1, k_att = jax.random.split(key, 4)

    # Small shapes consistent with the module: fc1 is fixed at in_features=1024,
    # att (= W) is (num_classes, att_dim).
    B, in_sz, att_dim, num_cls = 8, 1024, 85, 10

    feats = jax.random.normal(k_feat, (B, in_sz), dtype=jnp.float32)

    # fc1 params (deterministic nn.Linear-style uniform init)
    limit = 1.0 / (in_sz ** 0.5)
    fc1_weight = jax.random.uniform(
        k_w1, (att_dim, in_sz), jnp.float32, minval=-limit, maxval=limit
    )
    fc1_bias = jax.random.uniform(
        k_b1, (att_dim,), jnp.float32, minval=-limit, maxval=limit
    )

    # attribute matrix W (the `att` argument of ClsUnseenTrain)
    W = jax.random.normal(k_att, (num_cls, att_dim), dtype=jnp.float32)

    w1_p, b1_p, w_p = prepare_params(fc1_weight, fc1_bias, W)
    out = cls_unseen_forward(feats, w1_p, b1_p, w_p, num_cls=num_cls)
    out = jax.block_until_ready(out)

    # correctness check against plain-JAX reference of the PyTorch forward
    ref = (feats @ fc1_weight.T + fc1_bias) @ W.T
    assert out.shape == (B, num_cls)
    assert jnp.allclose(out, ref, atol=1e-3, rtol=1e-3), float(
        jnp.max(jnp.abs(out - ref))
    )

    print("KERNEL_OK")
</pallas_src>

<mosaic_0001>
module attributes {stable_mosaic.version = 11 : i64} {
  func.func @_cls_unseen_kernel(%arg0: i32, %arg1: memref<8x1024xf32, #tpu.memory_space<vmem>>, %arg2: memref<128x1024xf32, #tpu.memory_space<vmem>>, %arg3: memref<1x128xf32, #tpu.memory_space<vmem>>, %arg4: memref<128x128xf32, #tpu.memory_space<vmem>>, %arg5: memref<8x128xf32, #tpu.memory_space<vmem>>) attributes {dimension_semantics = [#tpu.dimension_semantics<arbitrary>], iteration_bounds = array<i64: 1>, scalar_prefetch = 0 : i64, scratch_operands = 0 : i64, tpu.core_type = #tpu.core_type<tc>, window_params = [{pipeline_mode = #tpu.pipeline_mode<synchronous>, transform_indices = @transform_0, window_bounds = array<i64: 8, 1024>}, {pipeline_mode = #tpu.pipeline_mode<synchronous>, transform_indices = @transform_1, window_bounds = array<i64: 128, 1024>}, {pipeline_mode = #tpu.pipeline_mode<synchronous>, transform_indices = @transform_2, window_bounds = array<i64: 1, 128>}, {pipeline_mode = #tpu.pipeline_mode<synchronous>, transform_indices = @transform_3, window_bounds = array<i64: 128, 128>}, {pipeline_mode = #tpu.pipeline_mode<synchronous>, transform_indices = @transform_4, window_bounds = array<i64: 8, 128>}]} {
    %c0 = arith.constant 0 : index
    %c0_0 = arith.constant 0 : index
    %0 = vector.load %arg1[%c0, %c0_0] : memref<8x1024xf32, #tpu.memory_space<vmem>>, vector<8x1024xf32>
    %c0_1 = arith.constant 0 : index
    %c0_2 = arith.constant 0 : index
    %1 = vector.load %arg2[%c0_1, %c0_2] : memref<128x1024xf32, #tpu.memory_space<vmem>>, vector<128x1024xf32>
    %cst = arith.constant dense<0.000000e+00> : vector<8x128xf32>
    %2 = tpu.matmul %0, %1, %cst {dimension_numbers = #tpu.dot_dimension_numbers<[1], [1], [0], [0], [0, 0, 1, 0], [], []>} : vector<8x1024xf32>, vector<128x1024xf32>, vector<8x128xf32> -> vector<8x128xf32>
    %c0_3 = arith.constant 0 : index
    %c0_4 = arith.constant 0 : index
    %3 = vector.load %arg3[%c0_3, %c0_4] : memref<1x128xf32, #tpu.memory_space<vmem>>, vector<1x128xf32>
    %4 = vector.broadcast %3 : vector<1x128xf32> to vector<8x128xf32>
    %5 = arith.addf %2, %4 : vector<8x128xf32>
    %c0_5 = arith.constant 0 : index
    %c0_6 = arith.constant 0 : index
    %6 = vector.load %arg4[%c0_5, %c0_6] : memref<128x128xf32, #tpu.memory_space<vmem>>, vector<128x128xf32>
    %cst_7 = arith.constant dense<0.000000e+00> : vector<8x128xf32>
    %7 = tpu.matmul %5, %6, %cst_7 {dimension_numbers = #tpu.dot_dimension_numbers<[1], [1], [0], [0], [0, 0, 1, 0], [], []>} : vector<8x128xf32>, vector<128x128xf32>, vector<8x128xf32> -> vector<8x128xf32>
    %c0_8 = arith.constant 0 : index
    %c0_9 = arith.constant 0 : index
    %8 = vector.load %arg5[%c0_8, %c0_9] : memref<8x128xf32, #tpu.memory_space<vmem>>, vector<8x128xf32>
    tpu.vector_store %arg5[%c0_8, %c0_9], %7 {strides = array<i32>} : memref<8x128xf32, #tpu.memory_space<vmem>>, vector<8x128xf32>,
    return
  }
  func.func @transform_0(%arg0: i32) -> (i32, i32) {
    %c0_i32 = arith.constant 0 : i32
    %c0_i32_0 = arith.constant 0 : i32
    %c0_i32_1 = arith.constant 0 : i32
    return %c0_i32, %c0_i32_0 : i32, i32
  }
  func.func @transform_1(%arg0: i32) -> (i32, i32) {
    %c0_i32 = arith.constant 0 : i32
    %c0_i32_0 = arith.constant 0 : i32
    %c0_i32_1 = arith.constant 0 : i32
    return %c0_i32, %c0_i32_0 : i32, i32
  }
  func.func @transform_2(%arg0: i32) -> (i32, i32) {
    %c0_i32 = arith.constant 0 : i32
    %c0_i32_0 = arith.constant 0 : i32
    %c0_i32_1 = arith.constant 0 : i32
    return %c0_i32, %c0_i32_0 : i32, i32
  }
  func.func @transform_3(%arg0: i32) -> (i32, i32) {
    %c0_i32 = arith.constant 0 : i32
    %c0_i32_0 = arith.constant 0 : i32
    %c0_i32_1 = arith.constant 0 : i32
    return %c0_i32, %c0_i32_0 : i32, i32
  }
  func.func @transform_4(%arg0: i32) -> (i32, i32) {
    %c0_i32 = arith.constant 0 : i32
    %c0_i32_0 = arith.constant 0 : i32
    %c0_i32_1 = arith.constant 0 : i32
    return %c0_i32, %c0_i32_0 : i32, i32
  }
}

</mosaic_0001>

<llo_original>
// kernel: cls_unseen_forward.1
$region0: #{cls_unseen_forward.1}
  #allocation0 [shape = 'u32[]', space=smem, size = 0x4, offset = 0x4, fixed_abs, tag = 'smem constant byte address 0x4 - core index']
  #allocation1 [shape = 'u32[72,128]{1,0:T(1,128)}', space=vmem, size = 0x9000, scoped, tag = 'internal scratch']
  %s0 = inlined_call_operand.hbm [shape: f32[8,1024], index: 0, kind: input, shape index: {}]
  %s1 = inlined_call_operand.hbm [shape: f32[128,1024], index: 1, kind: input, shape index: {}]
  %s2 = inlined_call_operand.vmem [shape: f32[1,128], index: 2, kind: input, shape index: {}]
  %s3 = inlined_call_operand.hbm [shape: f32[128,128], index: 3, kind: input, shape index: {}]
  %s4 = inlined_call_operand.hbm [shape: f32[8,128], index: 4, kind: output, shape index: {}]
  %s5 = sld [smem:[#allocation0]]
  $region38: #{cls_unseen_forward.1} parent=0
    _
  %s7 = ssub.s32 1, %s5
  %s8 = scalar_select 0, %s7, %s5
  $region1: #{cls_unseen_forward.1} parent=0
    #allocation2 [shape = 'u8[32768]{0}', space=vmem, size = 0x8000, scoped, tag = 'input window, operand 0, single buffered']
    #allocation3 [shape = 's32[1]{0}', space=sflag, size = 0x4, scoped, tag = 'scoped memory for cls_unseen_forward.1']
    #allocation4 [shape = 's32[1]{0}', space=sflag, size = 0x4, scoped, tag = 'scoped memory for cls_unseen_forward.1']
    #allocation5 [shape = 'u8[524288]{0}', space=vmem, size = 0x80000, scoped, tag = 'input window, operand 1, single buffered']
    #allocation6 [shape = 's32[1]{0}', space=sflag, size = 0x4, scoped, tag = 'scoped memory for cls_unseen_forward.1']
    #allocation7 [shape = 'u8[65536]{0}', space=vmem, size = 0x10000, scoped, tag = 'input window, operand 3, single buffered']
    #allocation8 [shape = 'u8[4096]{0}', space=vmem, size = 0x1000, scoped, tag = 'output window, operand 0, single buffered']
    %9 = vsyncpa [#allocation3], 0
    %10 = vsyncpa [#allocation6], 0
    %11 = vsyncpa [#allocation4], 0
    // Predicated region
    $region2: #{cls_unseen_forward.1} parent=1 // pred_check
      _
    $region3: #{cls_unseen_forward.1} parent=1 // pred_check_branch
      %13 = sbr.rel (0) target = $region5
    $region4: #{cls_unseen_forward.1} parent=1 // pred_region
      %15 = vsyncadd [#allocation3], 0
      %s17 = sshll.u32 %s0, 4
      %s18 = int_to_ptr.hbm [resolvable:$true] %s17
      %s19 = sshll.u32 [#allocation2], 4
      %s20 = int_to_ptr.vmem [resolvable:$true] %s19
      %22 = dma.hbm_to_vmem [thread:$0]  %s18, 1024, %s20, [#allocation3]
    $region5: #{cls_unseen_forward.1} parent=1 // pred_fallthru
      _
    // Predicated region
    $region6: #{cls_unseen_forward.1} parent=1 // pred_check
      _
    $region7: #{cls_unseen_forward.1} parent=1 // pred_check_branch
      %24 = sbr.rel (0) target = $region9
    $region8: #{cls_unseen_forward.1} parent=1 // pred_region
      %26 = vsyncadd [#allocation6], 0
      %s27 = sshll.u32 %s1, 4
      %s28 = int_to_ptr.hbm [resolvable:$true] %s27
      %s29 = sshll.u32 [#allocation5], 4
      %s30 = int_to_ptr.vmem [resolvable:$true] %s29
      %35 = dma.hbm_to_vmem [thread:$0]  %s28, 16384, %s30, [#allocation6], 1024, 1024, 64
    $region9: #{cls_unseen_forward.1} parent=1 // pred_fallthru
      _
    // Predicated region
    $region10: #{cls_unseen_forward.1} parent=1 // pred_check
      _
    $region11: #{cls_unseen_forward.1} parent=1 // pred_check_branch
      %37 = sbr.rel (0) target = $region13
    $region12: #{cls_unseen_forward.1} parent=1 // pred_region
      _
    $region13: #{cls_unseen_forward.1} parent=1 // pred_fallthru
      _
    // Predicated region
    $region14: #{cls_unseen_forward.1} parent=1 // pred_check
      _
    $region15: #{cls_unseen_forward.1} parent=1 // pred_check_branch
      %39 = sbr.rel (0) target = $region17
    $region16: #{cls_unseen_forward.1} parent=1 // pred_region
      %41 = vsyncadd [#allocation6], 0
      %s42 = sshll.u32 %s3, 4
      %s43 = int_to_ptr.hbm [resolvable:$true] %s42
      %s44 = sshll.u32 [#allocation7], 4
      %s45 = int_to_ptr.vmem [resolvable:$true] %s44
      %50 = dma.hbm_to_vmem [thread:$0]  %s43, 2048, %s45, [#allocation6], 128, 128, 8
    $region17: #{cls_unseen_forward.1} parent=1 // pred_fallthru
      _
    // Predicated region
    $region18: #{cls_unseen_forward.1} parent=1 // pred_check
      _
    $region19: #{cls_unseen_forward.1} parent=1 // pred_check_branch
      %52 = sbr.rel (0) target = $region21
    $region20: #{cls_unseen_forward.1} parent=1 // pred_region
      %54 = dma.done [#allocation3], 1024
    $region21: #{cls_unseen_forward.1} parent=1 // pred_fallthru
      _
    // Predicated region
    $region22: #{cls_unseen_forward.1} parent=1 // pred_check
      _
    $region23: #{cls_unseen_forward.1} parent=1 // pred_check_branch
      %56 = sbr.rel (0) target = $region25
    $region24: #{cls_unseen_forward.1} parent=1 // pred_region
      %58 = dma.done [#allocation6], 16384
    $region25: #{cls_unseen_forward.1} parent=1 // pred_fallthru
      _
    // Predicated region
    $region26: #{cls_unseen_forward.1} parent=1 // pred_check
      _
    $region27: #{cls_unseen_forward.1} parent=1 // pred_check_branch
      %60 = sbr.rel (0) target = $region29
    $region28: #{cls_unseen_forward.1} parent=1 // pred_region
      %62 = dma.done [#allocation6], 2048
    $region29: #{cls_unseen_forward.1} parent=1 // pred_fallthru
      _
    %v63 = vld [vmem:[#allocation2] sm:$0xff]
    %v64 = vld [vmem:[#allocation2 + $0x8] sm:$0xff]
    %v65 = vld [vmem:[#allocation2 + $0x10] sm:$0xff]
    %v66 = vld [vmem:[#allocation2 + $0x18] sm:$0xff]
    %v67 = vld [vmem:[#allocation2 + $0x20] sm:$0xff]
    %v68 = vld [vmem:[#allocation2 + $0x28] sm:$0xff]
    %v69 = vld [vmem:[#allocation2 + $0x30] sm:$0xff]
    %v70 = vld [vmem:[#allocation2 + $0x38] sm:$0xff]
    %v71 = vld [vmem:[#allocation5] sm:$0xff]
    %v72 = vld [vmem:[#allocation5 + $0x8] sm:$0xff]
    %v73 = vld [vmem:[#allocation5 + $0x10] sm:$0xff]
    %v74 = vld [vmem:[#allocation5 + $0x18] sm:$0xff]
    %v75 = vld [vmem:[#allocation5 + $0x20] sm:$0xff]
    %v76 = vld [vmem:[#allocation5 + $0x28] sm:$0xff]
    %v77 = vld [vmem:[#allocation5 + $0x30] sm:$0xff]
    %v78 = vld [vmem:[#allocation5 + $0x38] sm:$0xff]
    %v79 = vld [vmem:[#allocation5 + $0x40] sm:$0xff]
    %v80 = vld [vmem:[#allocation5 + $0x48] sm:$0xff]
    %v81 = vld [vmem:[#allocation5 + $0x50] sm:$0xff]
    %v82 = vld [vmem:[#allocation5 + $0x58] sm:$0xff]
    %v83 = vld [vmem:[#allocation5 + $0x60] sm:$0xff]
    %v84 = vld [vmem:[#allocation5 + $0x68] sm:$0xff]
    %v85 = vld [vmem:[#allocation5 + $0x70] sm:$0xff]
    %v86 = vld [vmem:[#allocation5 + $0x78] sm:$0xff]
    %v87 = vld [vmem:[#allocation5 + $0x80] sm:$0xff]
    %v88 = vld [vmem:[#allocation5 + $0x88] sm:$0xff]
    %v89 = vld [vmem:[#allocation5 + $0x90] sm:$0xff]
    %v90 = vld [vmem:[#allocation5 + $0x98] sm:$0xff]
    %v91 = vld [vmem:[#allocation5 + $0xa0] sm:$0xff]
    %v92 = vld [vmem:[#allocation5 + $0xa8] sm:$0xff]
    %v93 = vld [vmem:[#allocation5 + $0xb0] sm:$0xff]
    %v94 = vld [vmem:[#allocation5 + $0xb8] sm:$0xff]
    %v95 = vld [vmem:[#allocation5 + $0xc0] sm:$0xff]
    %v96 = vld [vmem:[#allocation5 + $0xc8] sm:$0xff]
    %v97 = vld [vmem:[#allocation5 + $0xd0] sm:$0xff]
    %v98 = vld [vmem:[#allocation5 + $0xd8] sm:$0xff]
    %v99 = vld [vmem:[#allocation5 + $0xe0] sm:$0xff]
    %v100 = vld [vmem:[#allocation5 + $0xe8] sm:$0xff]
    %v101 = vld [vmem:[#allocation5 + $0xf0] sm:$0xff]
    %v102 = vld [vmem:[#allocation5 + $0xf8] sm:$0xff]
    %v103 = vld [vmem:[#allocation5 + $0x100] sm:$0xff]
    %v104 = vld [vmem:[#allocation5 + $0x108] sm:$0xff]
    %v105 = vld [vmem:[#allocation5 + $0x110] sm:$0xff]
    %v106 = vld [vmem:[#allocation5 + $0x118] sm:$0xff]
    %v107 = vld [vmem:[#allocation5 + $0x120] sm:$0xff]
    %v108 = vld [vmem:[#allocation5 + $0x128] sm:$0xff]
    %v109 = vld [vmem:[#allocation5 + $0x130] sm:$0xff]
    %v110 = vld [vmem:[#allocation5 + $0x138] sm:$0xff]
    %v111 = vld [vmem:[#allocation5 + $0x140] sm:$0xff]
    %v112 = vld [vmem:[#allocation5 + $0x148] sm:$0xff]
    %v113 = vld [vmem:[#allocation5 + $0x150] sm:$0xff]
    %v114 = vld [vmem:[#allocation5 + $0x158] sm:$0xff]
    %v115 = vld [vmem:[#allocation5 + $0x160] sm:$0xff]
    %v116 = vld [vmem:[#allocation5 + $0x168] sm:$0xff]
    %v117 = vld [vmem:[#allocation5 + $0x170] sm:$0xff]
    %v118 = vld [vmem:[#allocation5 + $0x178] sm:$0xff]
    %v119 = vld [vmem:[#allocation5 + $0x180] sm:$0xff]
    %v120 = vld [vmem:[#allocation5 + $0x188] sm:$0xff]
    %v121 = vld [vmem:[#allocation5 + $0x190] sm:$0xff]
    %v122 = vld [vmem:[#allocation5 + $0x198] sm:$0xff]
    %v123 = vld [vmem:[#allocation5 + $0x1a0] sm:$0xff]
    %v124 = vld [vmem:[#allocation5 + $0x1a8] sm:$0xff]
    %v125 = vld [vmem:[#allocation5 + $0x1b0] sm:$0xff]
    %v126 = vld [vmem:[#allocation5 + $0x1b8] sm:$0xff]
    %v127 = vld [vmem:[#allocation5 + $0x1c0] sm:$0xff]
    %v128 = vld [vmem:[#allocation5 + $0x1c8] sm:$0xff]
    %v129 = vld [vmem:[#allocation5 + $0x1d0] sm:$0xff]
    %v130 = vld [vmem:[#allocation5 + $0x1d8] sm:$0xff]
    %v131 = vld [vmem:[#allocation5 + $0x1e0] sm:$0xff]
    %v132 = vld [vmem:[#allocation5 + $0x1e8] sm:$0xff]
    %v133 = vld [vmem:[#allocation5 + $0x1f0] sm:$0xff]
    %v134 = vld [vmem:[#allocation5 + $0x1f8] sm:$0xff]
    %v135 = vld [vmem:[#allocation5 + $0x200] sm:$0xff]
    %v136 = vld [vmem:[#allocation5 + $0x208] sm:$0xff]
    %v137 = vld [vmem:[#allocation5 + $0x210] sm:$0xff]
    %v138 = vld [vmem:[#allocation5 + $0x218] sm:$0xff]
    %v139 = vld [vmem:[#allocation5 + $0x220] sm:$0xff]
    %v140 = vld [vmem:[#allocation5 + $0x228] sm:$0xff]
    %v141 = vld [vmem:[#allocation5 + $0x230] sm:$0xff]
    %v142 = vld [vmem:[#allocation5 + $0x238] sm:$0xff]
    %v143 = vld [vmem:[#allocation5 + $0x240] sm:$0xff]
    %v144 = vld [vmem:[#allocation5 + $0x248] sm:$0xff]
    %v145 = vld [vmem:[#allocation5 + $0x250] sm:$0xff]
    %v146 = vld [vmem:[#allocation5 + $0x258] sm:$0xff]
    %v147 = vld [vmem:[#allocation5 + $0x260] sm:$0xff]
    %v148 = vld [vmem:[#allocation5 + $0x268] sm:$0xff]
    %v149 = vld [vmem:[#allocation5 + $0x270] sm:$0xff]
    %v150 = vld [vmem:[#allocation5 + $0x278] sm:$0xff]
    %v151 = vld [vmem:[#allocation5 + $0x280] sm:$0xff]
    %v152 = vld [vmem:[#allocation5 + $0x288] sm:$0xff]
    %v153 = vld [vmem:[#allocation5 + $0x290] sm:$0xff]
    %v154 = vld [vmem:[#allocation5 + $0x298] sm:$0xff]
    %v155 = vld [vmem:[#allocation5 + $0x2a0] sm:$0xff]
    %v156 = vld [vmem:[#allocation5 + $0x2a8] sm:$0xff]
    %v157 = vld [vmem:[#allocation5 + $0x2b0] sm:$0xff]
    %v158 = vld [vmem:[#allocation5 + $0x2b8] sm:$0xff]
    %v159 = vld [vmem:[#allocation5 + $0x2c0] sm:$0xff]
    %v160 = vld [vmem:[#allocation5 + $0x2c8] sm:$0xff]
    %v161 = vld [vmem:[#allocation5 + $0x2d0] sm:$0xff]
    %v162 = vld [vmem:[#allocation5 + $0x2d8] sm:$0xff]
    %v163 = vld [vmem:[#allocation5 + $0x2e0] sm:$0xff]
    %v164 = vld [vmem:[#allocation5 + $0x2e8] sm:$0xff]
    %v165 = vld [vmem:[#allocation5 + $0x2f0] sm:$0xff]
    %v166 = vld [vmem:[#allocation5 + $0x2f8] sm:$0xff]
    %v167 = vld [vmem:[#allocation5 + $0x300] sm:$0xff]
    %v168 = vld [vmem:[#allocation5 + $0x308] sm:$0xff]
    %v169 = vld [vmem:[#allocation5 + $0x310] sm:$0xff]
    %v170 = vld [vmem:[#allocation5 + $0x318] sm:$0xff]
    %v171 = vld [vmem:[#allocation5 + $0x320] sm:$0xff]
    %v172 = vld [vmem:[#allocation5 + $0x328] sm:$0xff]
    %v173 = vld [vmem:[#allocation5 + $0x330] sm:$0xff]
    %v174 = vld [vmem:[#allocation5 + $0x338] sm:$0xff]
    %v175 = vld [vmem:[#allocation5 + $0x340] sm:$0xff]
    %v176 = vld [vmem:[#allocation5 + $0x348] sm:$0xff]
    %v177 = vld [vmem:[#allocation5 + $0x350] sm:$0xff]
    %v178 = vld [vmem:[#allocation5 + $0x358] sm:$0xff]
    %v179 = vld [vmem:[#allocation5 + $0x360] sm:$0xff]
    %v180 = vld [vmem:[#allocation5 + $0x368] sm:$0xff]
    %v181 = vld [vmem:[#allocation5 + $0x370] sm:$0xff]
    %v182 = vld [vmem:[#allocation5 + $0x378] sm:$0xff]
    %v183 = vld [vmem:[#allocation5 + $0x380] sm:$0xff]
    %v184 = vld [vmem:[#allocation5 + $0x388] sm:$0xff]
    %v185 = vld [vmem:[#allocation5 + $0x390] sm:$0xff]
    %v186 = vld [vmem:[#allocation5 + $0x398] sm:$0xff]
    %v187 = vld [vmem:[#allocation5 + $0x3a0] sm:$0xff]
    %v188 = vld [vmem:[#allocation5 + $0x3a8] sm:$0xff]
    %v189 = vld [vmem:[#allocation5 + $0x3b0] sm:$0xff]
    %v190 = vld [vmem:[#allocation5 + $0x3b8] sm:$0xff]
    %v191 = vld [vmem:[#allocation5 + $0x3c0] sm:$0xff]
    %v192 = vld [vmem:[#allocation5 + $0x3c8] sm:$0xff]
    %v193 = vld [vmem:[#allocation5 + $0x3d0] sm:$0xff]
    %v194 = vld [vmem:[#allocation5 + $0x3d8] sm:$0xff]
    %v195 = vld [vmem:[#allocation5 + $0x3e0] sm:$0xff]
    %v196 = vld [vmem:[#allocation5 + $0x3e8] sm:$0xff]
    %v197 = vld [vmem:[#allocation5 + $0x3f0] sm:$0xff]
    %v198 = vld [vmem:[#allocation5 + $0x3f8] sm:$0xff]
    %v199 = vld [vmem:[%s2] sm:$0x1]
    %v201 = vperm.slane %v199, 0
    %203 = vmatpush.xpose.msra.mxu0 %v191
    %204 = vmatpush.xpose.msra.mxu0 %v183
    %205 = vmatpush.xpose.msra.mxu0 %v175
    %206 = vmatpush.xpose.msra.mxu0 %v167
    %207 = vmatpush.xpose.msra.mxu0 %v159
    %208 = vmatpush.xpose.msra.mxu0 %v151
    %209 = vmatpush.xpose.msra.mxu0 %v143
    %210 = vmatpush.xpose.msra.mxu0 %v135
    %211 = vmatpush.xpose.msra.mxu0 %v127
    %212 = vmatpush.xpose.msra.mxu0 %v119
    %213 = vmatpush.xpose.msra.mxu0 %v111
    %214 = vmatpush.xpose.msra.mxu0 %v103
    %215 = vmatpush.xpose.msra.mxu0 %v95
    %216 = vmatpush.xpose.msra.mxu0 %v87
    %217 = vmatpush.xpose.msra.mxu0 %v79
    %218 = vmatpush.xpose.msra.mxu0 %v71
    %219 = vmatmul.f32.gmra.mxu0 %v63
    %v220 = vpop.f32.mrf.mxu0
    %v221 = vadd.f32 %v201, %v220
    %222 = vdwg.mxu0
    %223 = vmatpush.xpose.msra.mxu0 %v192
    %224 = vmatpush.xpose.msra.mxu0 %v184
    %225 = vmatpush.xpose.msra.mxu0 %v176
    %226 = vmatpush.xpose.msra.mxu0 %v168
    %227 = vmatpush.xpose.msra.mxu0 %v160
    %228 = vmatpush.xpose.msra.mxu0 %v152
    %229 = vmatpush.xpose.msra.mxu0 %v144
    %230 = vmatpush.xpose.msra.mxu0 %v136
    %231 = vmatpush.xpose.msra.mxu0 %v128
    %232 = vmatpush.xpose.msra.mxu0 %v120
    %233 = vmatpush.xpose.msra.mxu0 %v112
    %234 = vmatpush.xpose.msra.mxu0 %v104
    %235 = vmatpush.xpose.msra.mxu0 %v96
    %236 = vmatpush.xpose.msra.mxu0 %v88
    %237 = vmatpush.xpose.msra.mxu0 %v80
    %238 = vmatpush.xpose.msra.mxu0 %v72
    %239 = vmatmul.f32.gmra.mxu0 %v64
    %v240 = vpop.f32.mrf.mxu0
    %v241 = vadd.f32 %v221, %v240
    %242 = vdwg.mxu0
    %243 = vmatpush.xpose.msra.mxu0 %v193
    %244 = vmatpush.xpose.msra.mxu0 %v185
    %245 = vmatpush.xpose.msra.mxu0 %v177
    %246 = vmatpush.xpose.msra.mxu0 %v169
    %247 = vmatpush.xpose.msra.mxu0 %v161
    %248 = vmatpush.xpose.msra.mxu0 %v153
    %249 = vmatpush.xpose.msra.mxu0 %v145
    %250 = vmatpush.xpose.msra.mxu0 %v137
    %251 = vmatpush.xpose.msra.mxu0 %v129
    %252 = vmatpush.xpose.msra.mxu0 %v121
    %253 = vmatpush.xpose.msra.mxu0 %v113
    %254 = vmatpush.xpose.msra.mxu0 %v105
    %255 = vmatpush.xpose.msra.mxu0 %v97
    %256 = vmatpush.xpose.msra.mxu0 %v89
    %257 = vmatpush.xpose.msra.mxu0 %v81
    %258 = vmatpush.xpose.msra.mxu0 %v73
    %259 = vmatmul.f32.gmra.mxu0 %v65
    %v260 = vpop.f32.mrf.mxu0
    %v261 = vadd.f32 %v241, %v260
    %262 = vdwg.mxu0
    %263 = vmatpush.xpose.msra.mxu0 %v194
    %264 = vmatpush.xpose.msra.mxu0 %v186
    %265 = vmatpush.xpose.msra.mxu0 %v178
    %266 = vmatpush.xpose.msra.mxu0 %v170
    %267 = vmatpush.xpose.msra.mxu0 %v162
    %268 = vmatpush.xpose.msra.mxu0 %v154
    %269 = vmatpush.xpose.msra.mxu0 %v146
    %270 = vmatpush.xpose.msra.mxu0 %v138
    %271 = vmatpush.xpose.msra.mxu0 %v130
    %272 = vmatpush.xpose.msra.mxu0 %v122
    %273 = vmatpush.xpose.msra.mxu0 %v114
    %274 = vmatpush.xpose.msra.mxu0 %v106
    %275 = vmatpush.xpose.msra.mxu0 %v98
    %276 = vmatpush.xpose.msra.mxu0 %v90
    %277 = vmatpush.xpose.msra.mxu0 %v82
    %278 = vmatpush.xpose.msra.mxu0 %v74
    %279 = vmatmul.f32.gmra.mxu0 %v66
    %v280 = vpop.f32.mrf.mxu0
    %v281 = vadd.f32 %v261, %v280
    %282 = vdwg.mxu0
    %283 = vmatpush.xpose.msra.mxu0 %v195
    %284 = vmatpush.xpose.msra.mxu0 %v187
    %285 = vmatpush.xpose.msra.mxu0 %v179
    %286 = vmatpush.xpose.msra.mxu0 %v171
    %287 = vmatpush.xpose.msra.mxu0 %v163
    %288 = vmatpush.xpose.msra.mxu0 %v155
    %289 = vmatpush.xpose.msra.mxu0 %v147
    %290 = vmatpush.xpose.msra.mxu0 %v139
    %291 = vmatpush.xpose.msra.mxu0 %v131
    %292 = vmatpush.xpose.msra.mxu0 %v123
    %293 = vmatpush.xpose.msra.mxu0 %v115
    %294 = vmatpush.xpose.msra.mxu0 %v107
    %295 = vmatpush.xpose.msra.mxu0 %v99
    %296 = vmatpush.xpose.msra.mxu0 %v91
    %297 = vmatpush.xpose.msra.mxu0 %v83
    %298 = vmatpush.xpose.msra.mxu0 %v75
    %299 = vmatmul.f32.gmra.mxu0 %v67
    %v300 = vpop.f32.mrf.mxu0
    %v301 = vadd.f32 %v281, %v300
    %302 = vdwg.mxu0
    %303 = vmatpush.xpose.msra.mxu0 %v196
    %304 = vmatpush.xpose.msra.mxu0 %v188
    %305 = vmatpush.xpose.msra.mxu0 %v180
    %306 = vmatpush.xpose.msra.mxu0 %v172
    %307 = vmatpush.xpose.msra.mxu0 %v164
    %308 = vmatpush.xpose.msra.mxu0 %v156
    %309 = vmatpush.xpose.msra.mxu0 %v148
    %310 = vmatpush.xpose.msra.mxu0 %v140
    %311 = vmatpush.xpose.msra.mxu0 %v132
    %312 = vmatpush.xpose.msra.mxu0 %v124
    %313 = vmatpush.xpose.msra.mxu0 %v116
    %314 = vmatpush.xpose.msra.mxu0 %v108
    %315 = vmatpush.xpose.msra.mxu0 %v100
    %316 = vmatpush.xpose.msra.mxu0 %v92
    %317 = vmatpush.xpose.msra.mxu0 %v84
    %318 = vmatpush.xpose.msra.mxu0 %v76
    %319 = vmatmul.f32.gmra.mxu0 %v68
    %v320 = vpop.f32.mrf.mxu0
    %v321 = vadd.f32 %v301, %v320
    %322 = vdwg.mxu0
    %323 = vmatpush.xpose.msra.mxu0 %v197
    %324 = vmatpush.xpose.msra.mxu0 %v189
    %325 = vmatpush.xpose.msra.mxu0 %v181
    %326 = vmatpush.xpose.msra.mxu0 %v173
    %327 = vmatpush.xpose.msra.mxu0 %v165
    %328 = vmatpush.xpose.msra.mxu0 %v157
    %329 = vmatpush.xpose.msra.mxu0 %v149
    %330 = vmatpush.xpose.msra.mxu0 %v141
    %331 = vmatpush.xpose.msra.mxu0 %v133
    %332 = vmatpush.xpose.msra.mxu0 %v125
    %333 = vmatpush.xpose.msra.mxu0 %v117
    %334 = vmatpush.xpose.msra.mxu0 %v109
    %335 = vmatpush.xpose.msra.mxu0 %v101
    %336 = vmatpush.xpose.msra.mxu0 %v93
    %337 = vmatpush.xpose.msra.mxu0 %v85
    %338 = vmatpush.xpose.msra.mxu0 %v77
    %339 = vmatmul.f32.gmra.mxu0 %v69
    %v340 = vpop.f32.mrf.mxu0
    %v341 = vadd.f32 %v321, %v340
    %342 = vdwg.mxu0
    %343 = vmatpush.xpose.msra.mxu0 %v198
    %344 = vmatpush.xpose.msra.mxu0 %v190
    %345 = vmatpush.xpose.msra.mxu0 %v182
    %346 = vmatpush.xpose.msra.mxu0 %v174
    %347 = vmatpush.xpose.msra.mxu0 %v166
    %348 = vmatpush.xpose.msra.mxu0 %v158
    %349 = vmatpush.xpose.msra.mxu0 %v150
    %350 = vmatpush.xpose.msra.mxu0 %v142
    %351 = vmatpush.xpose.msra.mxu0 %v134
    %352 = vmatpush.xpose.msra.mxu0 %v126
    %353 = vmatpush.xpose.msra.mxu0 %v118
    %354 = vmatpush.xpose.msra.mxu0 %v110
    %355 = vmatpush.xpose.msra.mxu0 %v102
    %356 = vmatpush.xpose.msra.mxu0 %v94
    %357 = vmatpush.xpose.msra.mxu0 %v86
    %358 = vmatpush.xpose.msra.mxu0 %v78
    %359 = vmatmul.f32.gmra.mxu0 %v70
    %v360 = vpop.f32.mrf.mxu0
    %v361 = vadd.f32 %v341, %v360
    %362 = vdwg.mxu0
    %v363 = vld [vmem:[#allocation7] sm:$0xff]
    %v364 = vld [vmem:[#allocation7 + $0x8] sm:$0xff]
    %v365 = vld [vmem:[#allocation7 + $0x10] sm:$0xff]
    %v366 = vld [vmem:[#allocation7 + $0x18] sm:$0xff]
    %v367 = vld [vmem:[#allocation7 + $0x20] sm:$0xff]
    %v368 = vld [vmem:[#allocation7 + $0x28] sm:$0xff]
    %v369 = vld [vmem:[#allocation7 + $0x30] sm:$0xff]
    %v370 = vld [vmem:[#allocation7 + $0x38] sm:$0xff]
    %v371 = vld [vmem:[#allocation7 + $0x40] sm:$0xff]
    %v372 = vld [vmem:[#allocation7 + $0x48] sm:$0xff]
    %v373 = vld [vmem:[#allocation7 + $0x50] sm:$0xff]
    %v374 = vld [vmem:[#allocation7 + $0x58] sm:$0xff]
    %v375 = vld [vmem:[#allocation7 + $0x60] sm:$0xff]
    %v376 = vld [vmem:[#allocation7 + $0x68] sm:$0xff]
    %v377 = vld [vmem:[#allocation7 + $0x70] sm:$0xff]
    %v378 = vld [vmem:[#allocation7 + $0x78] sm:$0xff]
    %379 = vmatpush.xpose.msra.mxu0 %v378
    %380 = vmatpush.xpose.msra.mxu0 %v377
    %381 = vmatpush.xpose.msra.mxu0 %v376
    %382 = vmatpush.xpose.msra.mxu0 %v375
    %383 = vmatpush.xpose.msra.mxu0 %v374
    %384 = vmatpush.xpose.msra.mxu0 %v373
    %385 = vmatpush.xpose.msra.mxu0 %v372
    %386 = vmatpush.xpose.msra.mxu0 %v371
    %387 = vmatpush.xpose.msra.mxu0 %v370
    %388 = vmatpush.xpose.msra.mxu0 %v369
    %389 = vmatpush.xpose.msra.mxu0 %v368
    %390 = vmatpush.xpose.msra.mxu0 %v367
    %391 = vmatpush.xpose.msra.mxu0 %v366
    %392 = vmatpush.xpose.msra.mxu0 %v365
    %393 = vmatpush.xpose.msra.mxu0 %v364
    %394 = vmatpush.xpose.msra.mxu0 %v363
    %395 = vmatmul.f32.gmra.mxu0 %v361
    %v396 = vpop.f32.mrf.mxu0
    %v397 = vadd.f32 0.0, %v396
    %398 = vdwg.mxu0
    %399 = vst [vmem:[#allocation8] sm:$0xff] %v397
    // Predicated region
    $region30: #{cls_unseen_forward.1} parent=1 // pred_check
      _
    $region31: #{cls_unseen_forward.1} parent=1 // pred_check_branch
      %401 = sbr.rel (0) target = $region33
    $region32: #{cls_unseen_forward.1} parent=1 // pred_region
      %403 = vsyncadd [#allocation4], 0
      %s405 = sshll.u32 [#allocation8], 4
      %s406 = int_to_ptr.vmem [resolvable:$true] %s405
      %s407 = sshll.u32 %s4, 4
      %s408 = int_to_ptr.hbm [resolvable:$true] %s407
      %410 = dma.vmem_to_hbm [thread:$0]  %s406, 128, %s408, [#allocation4]
    $region33: #{cls_unseen_forward.1} parent=1 // pred_fallthru
      _
    // Predicated region
    $region34: #{cls_unseen_forward.1} parent=1 // pred_check
      _
    $region35: #{cls_unseen_forward.1} parent=1 // pred_check_branch
      %412 = sbr.rel (0) target = $region37
    $region36: #{cls_unseen_forward.1} parent=1 // pred_region
      %414 = dma.done [#allocation4], 128
    $region37: #{cls_unseen_forward.1} parent=1 // pred_fallthru
      _
    %415 = vsyncpa [#allocation3], 1
    %416 = vsyncpa [#allocation6], 1
    %417 = vsyncpa [#allocation4], 1

</llo_original>
